<compile_context>
chip_gen: v7x
topology: tpu7x:2x2x1
jax: 0.10.0
libtpu: 0.0.40
codegen_flags: <defaults>
</compile_context>

<pallas_src>
import jax
import jax.numpy as jnp
from jax.experimental import pallas as pl
from jax.experimental.pallas import tpu as pltpu


def _bias_add_kernel(x_ref, b_ref, o_ref):
    # x_ref/o_ref: (S_TILE, R_TILE, LANE); b_ref: (1, R_TILE, LANE).
    # The leading-dim broadcast is free; one load-add-store per block.
    o_ref[...] = x_ref[...] + b_ref[...]


def _tpu_budgets():
    """Return (block_target_bytes, vmem_limit_bytes), generation-aware."""
    vmem_cap = None
    try:
        vmem_cap = pltpu.get_tpu_info().vmem_capacity_bytes
    except Exception:
        vmem_cap = None
    if vmem_cap is None:
        vmem_cap = 64 * 1024 * 1024  # conservative (v7x-sized) fallback
    if vmem_cap >= 96 * 1024 * 1024:
        # v5e / v6e: 128 MiB physical VMEM -> 8 MiB blocks, 64 MiB scoped.
        return 8 * 1024 * 1024, 64 * 1024 * 1024
    # v7x: 64 MiB physical VMEM -> 4 MiB blocks, <= 48 MiB scoped.
    return 4 * 1024 * 1024, 48 * 1024 * 1024


def _choose_tiles(n, flat, itemsize, block_target):
    """Factor the per-sample flat length into (lane, rows) and pick tiles."""
    # Lane width: a multiple of 128 dividing `flat`; prefer the largest
    # (<= 2048) whose row count is also a multiple of 8 (dense sublanes).
    lane = None
    lane_rows8 = None
    t = 128
    while t <= min(flat, 2048):
        if flat % t == 0:
            lane = t
            if (flat // t) % 8 == 0:
                lane_rows8 = t
        t += 128
    if lane_rows8 is not None:
        lane = lane_rows8
    if lane is None:
        # TODO(synk): no 128-multiple divides C*H*W (tiny channel counts with
        # odd spatial sizes); fall back to one full-extent row per sample
        # (masked lane stores, still correct).
        lane = flat
    rows = flat // lane

    # Row tile: full slab if it fits the block target, else the largest
    # multiple-of-8 divisor of `rows` that fits.
    slab_bytes = rows * lane * itemsize
    if slab_bytes <= block_target:
        r_tile = rows
    else:
        r_tile = rows  # fallback (rare; may exceed the soft target)
        max_rows = max(8, block_target // (lane * itemsize))
        start = (min(rows, max_rows) // 8) * 8
        for rt in range(start, 0, -8):
            if rows % rt == 0:
                r_tile = rt
                break

    # Sample tile: pack several whole samples per block when slabs are small.
    s_tile = 1
    per_sample_block = r_tile * lane * itemsize
    max_s = max(1, block_target // per_sample_block)
    if r_tile == rows:
        for st in range(min(n, max_s), 0, -1):
            if n % st == 0:
                s_tile = st
                break
    return lane, rows, r_tile, s_tile


def learnable_bias(x: jax.Array, bias: jax.Array) -> jax.Array:
    """x: (N, C, H, W); bias: (1, C, 1, 1). Returns x + bias (broadcast)."""
    n, c, h, w = x.shape
    assert bias.shape == (1, c, 1, 1)
    flat = c * h * w

    itemsize = jnp.dtype(x.dtype).itemsize
    block_target, vmem_limit = _tpu_budgets()
    lane, rows, r_tile, s_tile = _choose_tiles(n, flat, itemsize, block_target)

    # Flat, lane-dense views. Note: bias is cast to x.dtype before the add,
    # so for bf16 activations the add happens in bf16 (PyTorch with an f32
    # bias parameter would promote to f32).
    x3 = x.reshape(n, rows, lane)
    b3 = (
        jnp.broadcast_to(bias.reshape(c, 1), (c, h * w))
        .reshape(1, rows, lane)
        .astype(x.dtype)
    )

    row_blocks = rows // r_tile
    sample_blocks = n // s_tile

    if row_blocks > 1:
        # Rows outer, samples inner: the bias block index only changes with
        # the outer axis, so it is re-DMA'd once per row block, not per step.
        grid = (row_blocks, sample_blocks)
        x_map = lambda r, s: (s, r, 0)
        b_map = lambda r, s: (0, r, 0)
    else:
        # One row block per sample: bias index is constant (fetched once);
        # put the (larger) sample axis first for megacore sharding.
        grid = (sample_blocks, row_blocks)
        x_map = lambda s, r: (s, r, 0)
        b_map = lambda s, r: (0, r, 0)

    out3 = pl.pallas_call(
        _bias_add_kernel,
        out_shape=jax.ShapeDtypeStruct((n, rows, lane), x.dtype),
        grid_spec=pltpu.PrefetchScalarGridSpec(
            num_scalar_prefetch=0,
            grid=grid,
            in_specs=[
                pl.BlockSpec((s_tile, r_tile, lane), x_map),
                pl.BlockSpec((1, r_tile, lane), b_map),
            ],
            out_specs=pl.BlockSpec((s_tile, r_tile, lane), x_map),
        ),
        compiler_params=pltpu.CompilerParams(
            # Pure elementwise op: every grid step is independent.
            dimension_semantics=("parallel", "parallel"),
            vmem_limit_bytes=vmem_limit,
        ),
    )(x3, b3)

    return out3.reshape(n, c, h, w)


if __name__ == "__main__":
    key = jax.random.PRNGKey(0)
    kx, kb, kx2, kb2 = jax.random.split(key, 4)

    # Small shape consistent with the module.
    N, C, H, W = 2, 4, 16, 16
    x = jax.random.normal(kx, (N, C, H, W), dtype=jnp.float32)
    # nn.Parameter(torch.zeros(1, C, 1, 1)) -> zeros; perturb so the
    # broadcast is actually exercised.
    bias = jax.random.normal(kb, (1, C, 1, 1), dtype=jnp.float32) * 0.1

    out = jax.block_until_ready(learnable_bias(x, bias))
    ref = x + bias
    assert out.shape == x.shape
    assert jnp.allclose(out, ref, atol=1e-6), "mismatch vs reference (16x16)"

    # Second tiny check exercising a ReActNet-style non-128-multiple spatial
    # size (7x7) through the flattened lane-dense path.
    N2, C2, H2, W2 = 2, 128, 7, 7
    x2 = jax.random.normal(kx2, (N2, C2, H2, W2), dtype=jnp.float32)
    bias2 = jax.random.normal(kb2, (1, C2, 1, 1), dtype=jnp.float32) * 0.1
    out2 = jax.block_until_ready(learnable_bias(x2, bias2))
    ref2 = x2 + bias2
    assert out2.shape == x2.shape
    assert jnp.allclose(out2, ref2, atol=1e-6), "mismatch vs reference (7x7)"

    print("KERNEL_OK")
</pallas_src>

<mosaic_0001>
module attributes {stable_mosaic.version = 11 : i64} {
  func.func @_bias_add_kernel(%arg0: i32, %arg1: i32, %arg2: memref<2x8x128xf32, #tpu.memory_space<vmem>>, %arg3: memref<1x8x128xf32, #tpu.memory_space<vmem>>, %arg4: memref<2x8x128xf32, #tpu.memory_space<vmem>>) attributes {dimension_semantics = [#tpu.dimension_semantics<parallel>, #tpu.dimension_semantics<parallel>], iteration_bounds = array<i64: 1, 1>, scalar_prefetch = 0 : i64, scratch_operands = 0 : i64, tpu.core_type = #tpu.core_type<tc>, window_params = [{transform_indices = @transform_0, window_bounds = array<i64: 2, 8, 128>}, {transform_indices = @transform_1, window_bounds = array<i64: 1, 8, 128>}, {transform_indices = @transform_2, window_bounds = array<i64: 2, 8, 128>}]} {
    %c0 = arith.constant 0 : index
    %c0_0 = arith.constant 0 : index
    %c0_1 = arith.constant 0 : index
    %0 = vector.load %arg2[%c0, %c0_0, %c0_1] : memref<2x8x128xf32, #tpu.memory_space<vmem>>, vector<2x8x128xf32>
    %c0_2 = arith.constant 0 : index
    %c0_3 = arith.constant 0 : index
    %c0_4 = arith.constant 0 : index
    %1 = vector.load %arg3[%c0_2, %c0_3, %c0_4] : memref<1x8x128xf32, #tpu.memory_space<vmem>>, vector<1x8x128xf32>
    %2 = vector.broadcast %1 : vector<1x8x128xf32> to vector<2x8x128xf32>
    %3 = arith.addf %0, %2 : vector<2x8x128xf32>
    %c0_5 = arith.constant 0 : index
    %c0_6 = arith.constant 0 : index
    %c0_7 = arith.constant 0 : index
    %4 = vector.load %arg4[%c0_5, %c0_6, %c0_7] : memref<2x8x128xf32, #tpu.memory_space<vmem>>, vector<2x8x128xf32>
    tpu.vector_store %arg4[%c0_5, %c0_6, %c0_7], %3 {strides = array<i32>} : memref<2x8x128xf32, #tpu.memory_space<vmem>>, vector<2x8x128xf32>,
    return
  }
  func.func @transform_0(%arg0: i32, %arg1: i32) -> (i32, i32, i32) {
    %c0_i32 = arith.constant 0 : i32
    %c0_i32_0 = arith.constant 0 : i32
    return %arg0, %arg1, %c0_i32 : i32, i32, i32
  }
  func.func @transform_1(%arg0: i32, %arg1: i32) -> (i32, i32, i32) {
    %c0_i32 = arith.constant 0 : i32
    %c0_i32_0 = arith.constant 0 : i32
    %c0_i32_1 = arith.constant 0 : i32
    return %c0_i32, %arg1, %c0_i32_0 : i32, i32, i32
  }
  func.func @transform_2(%arg0: i32, %arg1: i32) -> (i32, i32, i32) {
    %c0_i32 = arith.constant 0 : i32
    %c0_i32_0 = arith.constant 0 : i32
    return %arg0, %arg1, %c0_i32 : i32, i32, i32
  }
}

</mosaic_0001>

<llo_original>
// kernel: tpu_custom_call.1
$region0: #{tpu_custom_call.1}
  #allocation0 [shape = 'u32[]', space=smem, size = 0x4, offset = 0x4, fixed_abs, tag = 'smem constant byte address 0x4 - core index']
  #allocation1 [shape = 'u32[144,128]{1,0:T(1,128)}', space=vmem, size = 0x12000, scoped, tag = 'internal scratch']
  %s0 = inlined_call_operand.hbm [shape: f32[2,8,128], index: 0, kind: input, shape index: {}]
  %s1 = inlined_call_operand.hbm [shape: f32[1,8,128], index: 1, kind: input, shape index: {}]
  %s2 = inlined_call_operand.hbm [shape: f32[2,8,128], index: 2, kind: output, shape index: {}]
  %s3 = sld [smem:[#allocation0]]
  $region26: #{tpu_custom_call.1} parent=0
    _
  %s5 = ssub.s32 1, %s3
  %s6 = scalar_select 0, %s5, %s3
  $region1: #{tpu_custom_call.1} parent=0
    #allocation2 [shape = 'u8[8192]{0}', space=vmem, size = 0x2000, scoped, tag = 'input window, operand 0, single buffered']
    #allocation3 [shape = 's32[1]{0}', space=sflag, size = 0x4, scoped, tag = 'scoped memory for tpu_custom_call.1']
    #allocation4 [shape = 's32[1]{0}', space=sflag, size = 0x4, scoped, tag = 'scoped memory for tpu_custom_call.1']
    #allocation5 [shape = 'u8[4096]{0}', space=vmem, size = 0x1000, scoped, tag = 'input window, operand 1, single buffered']
    #allocation6 [shape = 's32[1]{0}', space=sflag, size = 0x4, scoped, tag = 'scoped memory for tpu_custom_call.1']
    #allocation7 [shape = 'u8[8192]{0}', space=vmem, size = 0x2000, scoped, tag = 'output window, operand 0, single buffered']
    %7 = vsyncpa [#allocation3], 0
    %8 = vsyncpa [#allocation6], 0
    %9 = vsyncpa [#allocation4], 0
    // Predicated region
    $region2: #{tpu_custom_call.1} parent=1 // pred_check
      _
    $region3: #{tpu_custom_call.1} parent=1 // pred_check_branch
      %11 = sbr.rel (0) target = $region5
    $region4: #{tpu_custom_call.1} parent=1 // pred_region
      %s13 = ssub.s32 256, 256
      %14 = vsyncadd [#allocation3], %s13
      %s15 = sshll.u32 [#allocation2], 4
      %s16 = int_to_ptr.vmem [resolvable:$true] %s15
      %21 = dma.hbm_to_vmem [thread:$0]  %s0, 256, %s16, [#allocation3], 128, 128, 8
    $region5: #{tpu_custom_call.1} parent=1 // pred_fallthru
      _
    // Predicated region
    $region6: #{tpu_custom_call.1} parent=1 // pred_check
      _
    $region7: #{tpu_custom_call.1} parent=1 // pred_check_branch
      %23 = sbr.rel (0) target = $region9
    $region8: #{tpu_custom_call.1} parent=1 // pred_region
      %s25 = ssub.s32 128, 128
      %26 = vsyncadd [#allocation6], %s25
      %s28 = sshll.u32 [#allocation5], 4
      %s29 = int_to_ptr.vmem [resolvable:$true] %s28
      %31 = dma.hbm_to_vmem [thread:$0]  %s1, 128, %s29, [#allocation6]
    $region9: #{tpu_custom_call.1} parent=1 // pred_fallthru
      _
    // Predicated region
    $region10: #{tpu_custom_call.1} parent=1 // pred_check
      _
    $region11: #{tpu_custom_call.1} parent=1 // pred_check_branch
      %33 = sbr.rel (0) target = $region13
    $region12: #{tpu_custom_call.1} parent=1 // pred_region
      %34 = dma.done [#allocation3], 256
    $region13: #{tpu_custom_call.1} parent=1 // pred_fallthru
      _
    // Predicated region
    $region14: #{tpu_custom_call.1} parent=1 // pred_check
      _
    $region15: #{tpu_custom_call.1} parent=1 // pred_check_branch
      %36 = sbr.rel (0) target = $region17
    $region16: #{tpu_custom_call.1} parent=1 // pred_region
      %37 = dma.done [#allocation6], 128
    $region17: #{tpu_custom_call.1} parent=1 // pred_fallthru
      _
    %v38 = vld [vmem:[#allocation2] sm:$0xff]
    %v39 = vld [vmem:[#allocation2 + $0x8] sm:$0xff]
    %v40 = vld [vmem:[#allocation5] sm:$0xff]
    %v41 = vadd.f32 %v38, %v40
    %v42 = vadd.f32 %v39, %v40
    %43 = vst [vmem:[#allocation7] sm:$0xff] %v41
    %44 = vst [vmem:[#allocation7 + $0x8] sm:$0xff] %v42
    // Predicated region
    $region18: #{tpu_custom_call.1} parent=1 // pred_check
      _
    $region19: #{tpu_custom_call.1} parent=1 // pred_check_branch
      %46 = sbr.rel (0) target = $region21
    $region20: #{tpu_custom_call.1} parent=1 // pred_region
      %s48 = ssub.s32 256, 256
      %49 = vsyncadd [#allocation4], %s48
      %s50 = sshll.u32 [#allocation7], 4
      %s51 = int_to_ptr.vmem [resolvable:$true] %s50
      %56 = dma.vmem_to_hbm [thread:$0]  %s51, 256, %s2, [#allocation4], 128, 128, 8
    $region21: #{tpu_custom_call.1} parent=1 // pred_fallthru
      _
    // Predicated region
    $region22: #{tpu_custom_call.1} parent=1 // pred_check
      _
    $region23: #{tpu_custom_call.1} parent=1 // pred_check_branch
      %58 = sbr.rel (0) target = $region25
    $region24: #{tpu_custom_call.1} parent=1 // pred_region
      %59 = dma.done [#allocation4], 256
    $region25: #{tpu_custom_call.1} parent=1 // pred_fallthru
      _
    %60 = vsyncpa [#allocation3], 1
    %61 = vsyncpa [#allocation6], 1
    %62 = vsyncpa [#allocation4], 1

</llo_original>
